<compile_context>
chip_gen: v5e
topology: v5e:2x2
jax: 0.10.0
libtpu: 0.0.40
codegen_flags: <defaults>
</compile_context>

<pallas_src>
import functools

import jax
import jax.numpy as jnp
from jax import lax
from jax.experimental import pallas as pl
from jax.experimental.pallas import tpu as pltpu

_INV_SQRT2 = 0.7071067811865476
_LANE = 128
_SUBLANE = 8


def _round_up(x, m):
    return ((x + m - 1) // m) * m


@functools.lru_cache(maxsize=1)
def _vmem_capacity_bytes():
    """Per-core VMEM capacity; conservative fallback (v7x = 64 MiB)."""
    try:
        info = pltpu.get_tpu_info()
        cap = int(getattr(info, "vmem_capacity_bytes", 0))
        if cap > 0:
            return cap
    except Exception:
        pass
    return 64 * 1024 * 1024


def _gelu(x, approx):
    if approx == "NONE":        # nn.GELU() default: exact erf-based GELU
        return 0.5 * x * (1.0 + lax.erf(x * _INV_SQRT2))
    if approx == "SIGMOID":     # x * sigmoid(1.702 x)
        return x * jax.nn.sigmoid(1.702 * x)
    if approx == "TANH":        # module's sigmoid-form tanh approximation
        return x * jax.nn.sigmoid(1.5957691669464111 * (x + 0.044715 * x * x * x))
    raise ValueError(f"unknown gelu approximation {approx!r}")


def _mlp_kernel(x_ref, we_ref, be_ref, ws_ref, bs_ref, o_ref, acc_ref, *,
                gelu_approx):
    # x_ref : (tm, C)   streamed in native dtype (f32), cast to bf16 here
    # we_ref: (C, th)   bf16 expand-weight tile,  be_ref: (1, th) f32
    # ws_ref: (th, C)   bf16 shrink-weight tile,  bs_ref: (1, C)  f32
    # o_ref : (tm, C)   output dtype;  acc_ref: (tm, C) f32 scratch accumulator
    h_idx = pl.program_id(1)

    @pl.when(h_idx == 0)
    def _():
        acc_ref[...] = jnp.zeros_like(acc_ref)

    x = x_ref[...].astype(we_ref.dtype)                 # in-kernel cast (no wrapper pass)
    h = jnp.dot(x, we_ref[...], preferred_element_type=jnp.float32)
    h = _gelu(h + be_ref[...], gelu_approx)             # f32 bias + GELU
    acc_ref[...] += jnp.dot(h.astype(ws_ref.dtype), ws_ref[...],
                            preferred_element_type=jnp.float32)

    @pl.when(h_idx == pl.num_programs(1) - 1)
    def _():
        o_ref[...] = (acc_ref[...] + bs_ref[...]).astype(o_ref.dtype)


def prepare_mlp_params(w_expand, b_expand, w_shrink, b_shrink, *,
                       compute_dtype=jnp.bfloat16):
    """One-time parameter prep: transpose, zero-pad H to a 128 multiple, cast.

    w_expand : (H, C)  Conv2d(C->H, 1x1) weight squeezed to (out, in)
    b_expand : (H,)
    w_shrink : (C, H)  Conv2d(H->C, 1x1) weight squeezed
    b_shrink : (C,)
    """
    H, C = w_expand.shape
    Hp = _round_up(H, _LANE)
    # Zero H-padding is exact: padded bias entries are 0 -> gelu(0) = 0, and
    # the matching rows of ws_t are 0, so padded hidden columns contribute
    # nothing. (Do NOT change the bias padding without revisiting this.)
    we_t = jnp.pad(jnp.transpose(w_expand),
                   ((0, 0), (0, Hp - H))).astype(compute_dtype)        # (C, Hp)
    ws_t = jnp.pad(jnp.transpose(w_shrink),
                   ((0, Hp - H), (0, 0))).astype(compute_dtype)        # (Hp, C)
    be = jnp.pad(b_expand.astype(jnp.float32), (0, Hp - H)).reshape(1, Hp)
    bs = b_shrink.astype(jnp.float32).reshape(1, C)
    return we_t, be, ws_t, bs


def _choose_hidden_tile(C, Hp, wbytes, weight_budget):
    # Keep both weight matrices fully resident (single-buffered) if they fit.
    if 2 * C * Hp * wbytes <= weight_budget:
        return Hp
    # Otherwise pick the largest 128-multiple dividing Hp whose
    # double-buffered (We + Ws) tiles fit the budget; 128 always divides Hp.
    max_th = weight_budget // (4 * C * wbytes)
    best = _LANE
    t = _LANE
    while t <= Hp:
        if Hp % t == 0 and t <= max_th:
            best = t
        t += _LANE
    return best


@functools.partial(jax.jit,
                   static_argnames=("tm", "out_dtype", "hidden_tile", "gelu_approx"))
def ti_compatible_mlp(x, we_t, be, ws_t, bs, *, tm=512, out_dtype=None,
                      hidden_tile=None, gelu_approx="NONE"):
    """
    x : (B, N, C); (we_t, be, ws_t, bs) from prepare_mlp_params.
    Returns (B, N, C) in out_dtype (default x.dtype; bf16 recommended for
    inference to halve the output HBM stream).
    """
    B, N, C = x.shape
    Cw, Hp = we_t.shape
    assert Cw == C and ws_t.shape == (Hp, C)
    M = B * N
    out_dtype = x.dtype if out_dtype is None else out_dtype

    x2 = x.reshape(M, C)          # view only: no pad, no cast (cast is in-kernel)

    # Row tile: multiple of 8 (sublane).  Cap at ~M/2 so small inputs still
    # give >= 2 grid steps for the v7x 2-TC parallel axis; shrink for tiny M.
    tm_eff = max(_SUBLANE, min(tm, _round_up(pl.cdiv(M, 2), _SUBLANE)))
    n_rows = pl.cdiv(M, tm_eff)   # ragged tail: Pallas clamps the partial block

    wbytes = jnp.dtype(we_t.dtype).itemsize
    x_bytes = jnp.dtype(x.dtype).itemsize
    out_bytes = jnp.dtype(out_dtype).itemsize

    vmem_cap = _vmem_capacity_bytes()
    if hidden_tile is None:
        th = _choose_hidden_tile(C, Hp, wbytes, weight_budget=vmem_cap // 2)
    else:
        th = hidden_tile
        assert th % _LANE == 0 and Hp % th == 0, \
            "hidden_tile must be a multiple of 128 that divides padded H"
    n_h = Hp // th
    resident = n_h == 1           # weights fully resident -> single-buffered
    wbuf = 1 if resident else 2

    vmem_needed = (
        wbuf * 2 * C * th * wbytes          # We + Ws tiles, wbuf buffers each
        + 2 * (th + C) * 4                  # bias tiles (tiny)
        + 2 * tm_eff * C * x_bytes          # double-buffered x tile (native dtype)
        + 2 * tm_eff * C * out_bytes        # double-buffered out tile
        + tm_eff * C * 4                    # f32 accumulator scratch
        + tm_eff * th * 4                   # f32 hidden intermediate
    )
    vmem_limit = int(min(max(vmem_needed * 3 // 2, 32 * 1024 * 1024),
                         vmem_cap - 4 * 1024 * 1024))

    weight_reads = 1 if resident else n_rows   # H-tiled path re-streams weights
    cost = pl.CostEstimate(
        flops=4 * M * C * Hp,                  # two matmuls, 2*M*K*N each
        transcendentals=M * Hp,                # one erf/sigmoid per hidden act
        bytes_accessed=(M * C * (x_bytes + out_bytes)
                        + weight_reads * 2 * C * Hp * wbytes
                        + (Hp + C) * 4),
    )

    def _spec(shape, imap, single_buffered):
        if single_buffered:
            return pl.BlockSpec(shape, imap, pipeline_mode=pl.Buffered(1))
        return pl.BlockSpec(shape, imap)

    out = pl.pallas_call(
        functools.partial(_mlp_kernel, gelu_approx=gelu_approx),
        out_shape=jax.ShapeDtypeStruct((M, C), out_dtype),
        grid_spec=pltpu.PrefetchScalarGridSpec(
            num_scalar_prefetch=0,
            grid=(n_rows, n_h),
            in_specs=[
                pl.BlockSpec((tm_eff, C), lambda i, h: (i, 0)),   # x rows (stream)
                _spec((C, th), lambda i, h: (0, h), resident),    # expand W tile
                _spec((1, th), lambda i, h: (0, h), resident),    # expand bias
                _spec((th, C), lambda i, h: (h, 0), resident),    # shrink W tile
                _spec((1, C), lambda i, h: (0, 0), True),         # shrink bias (const)
            ],
            out_specs=pl.BlockSpec((tm_eff, C), lambda i, h: (i, 0)),
            scratch_shapes=[pltpu.VMEM((tm_eff, C), jnp.float32)],
        ),
        compiler_params=pltpu.CompilerParams(
            dimension_semantics=("parallel", "arbitrary"),
            vmem_limit_bytes=vmem_limit,
        ),
        cost_estimate=cost,
    )(x2, we_t, be, ws_t, bs)

    return out.reshape(B, N, C)


def _reference(x, w_expand, b_expand, w_shrink, b_shrink, gelu_approx="NONE"):
    h = jnp.einsum("bnc,hc->bnh", x, w_expand) + b_expand
    h = _gelu(h, gelu_approx)
    return jnp.einsum("bnh,ch->bnc", h, w_shrink) + b_shrink


if __name__ == "__main__":
    key = jax.random.PRNGKey(0)
    keys = jax.random.split(key, 9)

    # ---- case 1: resident-weight path (single h step), exact GELU ----------
    B, N, C, Hd = 2, 8, 32, 128
    x = jax.random.normal(keys[0], (B, N, C), dtype=jnp.float32)
    w_expand = jax.random.normal(keys[1], (Hd, C), dtype=jnp.float32) * 0.05
    b_expand = jax.random.normal(keys[2], (Hd,), dtype=jnp.float32) * 0.05
    w_shrink = jax.random.normal(keys[3], (C, Hd), dtype=jnp.float32) * 0.05
    b_shrink = jax.random.normal(keys[4], (C,), dtype=jnp.float32) * 0.05

    params = prepare_mlp_params(w_expand, b_expand, w_shrink, b_shrink)
    y = jax.block_until_ready(ti_compatible_mlp(x, *params))
    y_ref = _reference(x, w_expand, b_expand, w_shrink, b_shrink)
    err = float(jnp.max(jnp.abs(y - y_ref)))
    # bf16 weight/activation streaming with f32 accumulation -> relaxed tol.
    assert jnp.allclose(y, y_ref, atol=5e-2, rtol=5e-2), \
        f"resident path mismatch vs reference (max abs err {err})"

    # ---- case 2: H-tiled reduction path (n_h > 1) --------------------------
    H2 = 256
    w_expand2 = jax.random.normal(keys[5], (H2, C), dtype=jnp.float32) * 0.05
    b_expand2 = jax.random.normal(keys[6], (H2,), dtype=jnp.float32) * 0.05
    w_shrink2 = jax.random.normal(keys[7], (C, H2), dtype=jnp.float32) * 0.05
    b_shrink2 = jax.random.normal(keys[8], (C,), dtype=jnp.float32) * 0.05

    params2 = prepare_mlp_params(w_expand2, b_expand2, w_shrink2, b_shrink2)
    y2 = jax.block_until_ready(ti_compatible_mlp(x, *params2, hidden_tile=128))
    y2_ref = _reference(x, w_expand2, b_expand2, w_shrink2, b_shrink2)
    err2 = float(jnp.max(jnp.abs(y2 - y2_ref)))
    assert jnp.allclose(y2, y2_ref, atol=5e-2, rtol=5e-2), \
        f"H-tiled path mismatch vs reference (max abs err {err2})"

    print("KERNEL_OK")
</pallas_src>

<mosaic_0001>
module attributes {stable_mosaic.version = 11 : i64} {
  func.func @_mlp_kernel(%arg0: i32, %arg1: i32, %arg2: memref<8x32xf32, #tpu.memory_space<vmem>>, %arg3: memref<32x128xbf16, #tpu.memory_space<vmem>>, %arg4: memref<1x128xf32, #tpu.memory_space<vmem>>, %arg5: memref<128x32xbf16, #tpu.memory_space<vmem>>, %arg6: memref<1x32xf32, #tpu.memory_space<vmem>>, %arg7: memref<8x32xf32, #tpu.memory_space<vmem>>, %arg8: memref<8x32xf32, #tpu.memory_space<vmem>>) attributes {dimension_semantics = [#tpu.dimension_semantics<parallel>, #tpu.dimension_semantics<arbitrary>], iteration_bounds = array<i64: 2, 1>, scalar_prefetch = 0 : i64, scratch_operands = 1 : i64, tpu.core_type = #tpu.core_type<tc>, window_params = [{transform_indices = @transform_0, window_bounds = array<i64: 8, 32>}, {pipeline_mode = #tpu.pipeline_mode<synchronous>, transform_indices = @transform_1, window_bounds = array<i64: 32, 128>}, {pipeline_mode = #tpu.pipeline_mode<synchronous>, transform_indices = @transform_2, window_bounds = array<i64: 1, 128>}, {pipeline_mode = #tpu.pipeline_mode<synchronous>, transform_indices = @transform_3, window_bounds = array<i64: 128, 32>}, {pipeline_mode = #tpu.pipeline_mode<synchronous>, transform_indices = @transform_4, window_bounds = array<i64: 1, 32>}, {transform_indices = @transform_5, window_bounds = array<i64: 8, 32>}]} {
    %c0_i32 = arith.constant 0 : i32
    %0 = arith.cmpi eq, %arg1, %c0_i32 : i32
    %1 = arith.extui %0 : i1 to i32
    %c0_i32_0 = arith.constant 0 : i32
    %2 = arith.cmpi ne, %1, %c0_i32_0 : i32
    scf.if %2 {
      %cst_18 = arith.constant 0.000000e+00 : f32
      %27 = vector.broadcast %cst_18 : f32 to vector<8x32xf32>
      %c0_19 = arith.constant 0 : index
      %c0_20 = arith.constant 0 : index
      %28 = vector.load %arg8[%c0_19, %c0_20] : memref<8x32xf32, #tpu.memory_space<vmem>>, vector<8x32xf32>
      tpu.vector_store %arg8[%c0_19, %c0_20], %27 {strides = array<i32>} : memref<8x32xf32, #tpu.memory_space<vmem>>, vector<8x32xf32>,
    } else {
    }
    %c0 = arith.constant 0 : index
    %c0_1 = arith.constant 0 : index
    %3 = vector.load %arg2[%c0, %c0_1] : memref<8x32xf32, #tpu.memory_space<vmem>>, vector<8x32xf32>
    %4 = arith.truncf %3 : vector<8x32xf32> to vector<8x32xbf16>
    %c0_2 = arith.constant 0 : index
    %c0_3 = arith.constant 0 : index
    %5 = vector.load %arg3[%c0_2, %c0_3] : memref<32x128xbf16, #tpu.memory_space<vmem>>, vector<32x128xbf16>
    %cst = arith.constant dense<0.000000e+00> : vector<8x128xf32>
    %6 = tpu.matmul %4, %5, %cst {dimension_numbers = #tpu.dot_dimension_numbers<[1], [0], [0], [1], [0, 0, 1, 1], [], []>} : vector<8x32xbf16>, vector<32x128xbf16>, vector<8x128xf32> -> vector<8x128xf32>
    %c0_4 = arith.constant 0 : index
    %c0_5 = arith.constant 0 : index
    %7 = vector.load %arg4[%c0_4, %c0_5] : memref<1x128xf32, #tpu.memory_space<vmem>>, vector<1x128xf32>
    %8 = vector.broadcast %7 : vector<1x128xf32> to vector<8x128xf32>
    %9 = arith.addf %6, %8 : vector<8x128xf32>
    %cst_6 = arith.constant 5.000000e-01 : f32
    %10 = vector.broadcast %cst_6 : f32 to vector<8x128xf32>
    %11 = arith.mulf %10, %9 : vector<8x128xf32>
    %cst_7 = arith.constant 0.707106769 : f32
    %12 = vector.broadcast %cst_7 : f32 to vector<8x128xf32>
    %13 = arith.mulf %9, %12 : vector<8x128xf32>
    %14 = math.erf %13 : vector<8x128xf32>
    %cst_8 = arith.constant 1.000000e+00 : f32
    %15 = vector.broadcast %cst_8 : f32 to vector<8x128xf32>
    %16 = arith.addf %15, %14 : vector<8x128xf32>
    %17 = arith.mulf %11, %16 : vector<8x128xf32>
    %c0_9 = arith.constant 0 : index
    %c0_10 = arith.constant 0 : index
    %18 = vector.load %arg8[%c0_9, %c0_10] : memref<8x32xf32, #tpu.memory_space<vmem>>, vector<8x32xf32>
    %19 = arith.truncf %17 : vector<8x128xf32> to vector<8x128xbf16>
    %c0_11 = arith.constant 0 : index
    %c0_12 = arith.constant 0 : index
    %20 = vector.load %arg5[%c0_11, %c0_12] : memref<128x32xbf16, #tpu.memory_space<vmem>>, vector<128x32xbf16>
    %cst_13 = arith.constant dense<0.000000e+00> : vector<8x32xf32>
    %21 = tpu.matmul %19, %20, %cst_13 {dimension_numbers = #tpu.dot_dimension_numbers<[1], [0], [0], [1], [0, 0, 1, 1], [], []>} : vector<8x128xbf16>, vector<128x32xbf16>, vector<8x32xf32> -> vector<8x32xf32>
    %22 = arith.addf %18, %21 : vector<8x32xf32>
    %c0_14 = arith.constant 0 : index
    %c0_15 = arith.constant 0 : index
    %23 = vector.load %arg8[%c0_14, %c0_15] : memref<8x32xf32, #tpu.memory_space<vmem>>, vector<8x32xf32>
    tpu.vector_store %arg8[%c0_14, %c0_15], %22 {strides = array<i32>} : memref<8x32xf32, #tpu.memory_space<vmem>>, vector<8x32xf32>,
    %c0_i32_16 = arith.constant 0 : i32
    %24 = arith.cmpi eq, %arg1, %c0_i32_16 : i32
    %25 = arith.extui %24 : i1 to i32
    %c0_i32_17 = arith.constant 0 : i32
    %26 = arith.cmpi ne, %25, %c0_i32_17 : i32
    scf.if %26 {
      %c0_18 = arith.constant 0 : index
      %c0_19 = arith.constant 0 : index
      %27 = vector.load %arg8[%c0_18, %c0_19] : memref<8x32xf32, #tpu.memory_space<vmem>>, vector<8x32xf32>
      %c0_20 = arith.constant 0 : index
      %c0_21 = arith.constant 0 : index
      %28 = vector.load %arg6[%c0_20, %c0_21] : memref<1x32xf32, #tpu.memory_space<vmem>>, vector<1x32xf32>
      %29 = vector.broadcast %28 : vector<1x32xf32> to vector<8x32xf32>
      %30 = arith.addf %27, %29 : vector<8x32xf32>
      %c0_22 = arith.constant 0 : index
      %c0_23 = arith.constant 0 : index
      %31 = vector.load %arg7[%c0_22, %c0_23] : memref<8x32xf32, #tpu.memory_space<vmem>>, vector<8x32xf32>
      tpu.vector_store %arg7[%c0_22, %c0_23], %30 {strides = array<i32>} : memref<8x32xf32, #tpu.memory_space<vmem>>, vector<8x32xf32>,
    } else {
    }
    return
  }
  func.func @transform_0(%arg0: i32, %arg1: i32) -> (i32, i32) {
    %c0_i32 = arith.constant 0 : i32
    %c0_i32_0 = arith.constant 0 : i32
    return %arg0, %c0_i32 : i32, i32
  }
  func.func @transform_1(%arg0: i32, %arg1: i32) -> (i32, i32) {
    %c0_i32 = arith.constant 0 : i32
    %c0_i32_0 = arith.constant 0 : i32
    return %c0_i32, %arg1 : i32, i32
  }
  func.func @transform_2(%arg0: i32, %arg1: i32) -> (i32, i32) {
    %c0_i32 = arith.constant 0 : i32
    %c0_i32_0 = arith.constant 0 : i32
    return %c0_i32, %arg1 : i32, i32
  }
  func.func @transform_3(%arg0: i32, %arg1: i32) -> (i32, i32) {
    %c0_i32 = arith.constant 0 : i32
    %c0_i32_0 = arith.constant 0 : i32
    return %arg1, %c0_i32 : i32, i32
  }
  func.func @transform_4(%arg0: i32, %arg1: i32) -> (i32, i32) {
    %c0_i32 = arith.constant 0 : i32
    %c0_i32_0 = arith.constant 0 : i32
    %c0_i32_1 = arith.constant 0 : i32
    return %c0_i32, %c0_i32_0 : i32, i32
  }
  func.func @transform_5(%arg0: i32, %arg1: i32) -> (i32, i32) {
    %c0_i32 = arith.constant 0 : i32
    %c0_i32_0 = arith.constant 0 : i32
    return %arg0, %c0_i32 : i32, i32
  }
}

</mosaic_0001>

<llo_original>
// kernel: ti_compatible_mlp.1
$region0: #{ti_compatible_mlp.1}
  #allocation0 [shape = 'u32[]', space=smem, size = 0x4, offset = 0x4, fixed_abs, tag = 'smem constant byte address 0x4 - core index']
  #allocation1 [shape = 'u32[72,128]{1,0:T(1,128)}', space=vmem, size = 0x9000, scoped, tag = 'internal scratch']
  #allocation2 [shape = 'f32[8,32]{1,0:T(8,128)}', space=vmem, size = 0x1000, scoped, tag = 'scratch operand']
  %s0 = inlined_call_operand.vmem [shape: f32[16,32], index: 0, kind: input, shape index: {}]
  %s1 = inlined_call_operand.vmem [shape: bf16[32,128], index: 1, kind: input, shape index: {}]
  %s2 = inlined_call_operand.vmem [shape: f32[1,128], index: 2, kind: input, shape index: {}]
  %s3 = inlined_call_operand.vmem [shape: bf16[128,32], index: 3, kind: input, shape index: {}]
  %s4 = inlined_call_operand.vmem [shape: f32[1,32], index: 4, kind: input, shape index: {}]
  %s5 = inlined_call_operand.hbm [shape: f32[16,32], index: 5, kind: output, shape index: {}]
  %s6 = sld [smem:[#allocation0]]
  $region61: #{ti_compatible_mlp.1} parent=0
    _
  %s8 = ssub.s32 1, %s6
  %s9 = scalar_select 0, %s8, %s6
  $region1: #{ti_compatible_mlp.1} parent=0
    #allocation3 [shape = 'u8[8192]{0}', space=vmem, size = 0x2000, scoped, tag = 'output window, operand 0']
    #allocation4 [shape = 's32[2]{0}', space=sflag, size = 0x8, scoped, tag = 'scoped memory for ti_compatible_mlp.1']
    %10 = vsyncpa [#allocation4], 0
    %s11 = scalar_lea.sflag [#allocation4], 1
    %12 = vsyncpa %s11, 0
    loop: start=0, step=1, limit=4
    $region2: #{ti_compatible_mlp.1} parent=1 // loop_pre_header
      _
    $region3: #{ti_compatible_mlp.1} parent=1 // loop_header
      %s14 = sphi 0, %s18
      %p15 = scmp.ge.s32.totalorder %s14, 4
      %s21 = sphi 0, %s33
      %s22 = sphi 0, %s29
      %s23 = sphi 0, %s21
      %s24 = sphi 0, %s22
      %s25 = sphi 0, %s23
      %s26 = sphi 0, %s24
      %s36 = sphi 0, %s38
      %s39 = sphi 0, %s36
      %s40 = sphi 0, %s39
      %s56 = sphi 0, %s40
      %s62 = sphi 0, %s64
      %s65 = sphi 0, %s62
      %s66 = sphi 0, %s65
      %s82 = sphi 0, %s66
      %s88 = sphi 0, %s90
      %s91 = sphi 0, %s88
      %s92 = sphi 0, %s91
      %s108 = sphi 0, %s92
      %s114 = sphi 0, %s116
      %s117 = sphi 0, %s114
      %s118 = sphi 0, %s117
      %s134 = sphi 0, %s118
      %s138 = sphi 0, %s138
      %s140 = sphi 0, %s138
      %s141 = sphi 0, %s140
      %s155 = sphi 0, %s141
      %s161 = sphi 0, %s163
      %s164 = sphi 0, %s161
      %s165 = sphi 0, %s164
      %s181 = sphi 0, %s165
    $region4: #{ti_compatible_mlp.1} parent=1 // loop_header_branch
      %17 = sbr.rel (%p15) target = $region8
    $region5: #{ti_compatible_mlp.1} parent=1 // loop_body
      %s19 = ssub.s32 %s14, 1
      %s20 = ssub.s32 %s14, 2
      %s27 = sadd.s32 1, %s22
      %p28 = scmp.ge.s32.totalorder %s27, 1
      %s29 = scalar_select %p28, 0, %s27
      %s30 = sadd.s32 1, %s21
      %s31 = scalar_select %p28, %s30, %s21
      %p32 = scmp.ge.s32.totalorder %s31, 2
      %s33 = scalar_select %p32, 0, %s31
      %s34 = ssub.s32 %s21, %s33
      %p35 = scmp.eq.s32.totalorder %s34, 0
      %s37 = sadd.s32 %s36, 1
      %s38 = scalar_select %p35, %s36, %s37
      %p41 = pneg %p35
      %p42 = scmp.eq.s32.totalorder %s14, 1
      %p43 = por %p41, %p42
      %p44 = scmp.ne.s32.totalorder %s36, %s39
      %p45 = scmp.eq.s32.totalorder %s14, 0
      %p46 = por %p44, %p45
      %p47 = scmp.ne.s32.totalorder %s36, %s39
      %p48 = scmp.eq.s32.totalorder %s19, 1
      %p49 = por %p47, %p48
      %p50 = scmp.ne.s32.totalorder %s39, %s40
      %p51 = scmp.eq.s32.totalorder %s19, 0
      %p52 = por %p50, %p51
      %p53 = scmp.ne.s32.totalorder %s39, %s40
      %p54 = scmp.eq.s32.totalorder %s20, 1
      %p55 = por %p53, %p54
      %p57 = scmp.ne.s32.totalorder %s40, %s56
      %p58 = scmp.eq.s32.totalorder %s20, 0
      %p59 = por %p57, %p58
      %s60 = ssub.s32 %s22, %s29
      %p61 = scmp.eq.s32.totalorder %s60, 0
      %s63 = sadd.s32 %s62, 1
      %s64 = scalar_select %p61, %s62, %s63
      %p67 = pneg %p61
      %p68 = scmp.eq.s32.totalorder %s14, 1
      %p69 = por %p67, %p68
      %p70 = scmp.ne.s32.totalorder %s62, %s65
      %p71 = scmp.eq.s32.totalorder %s14, 0
      %p72 = por %p70, %p71
      %p73 = scmp.ne.s32.totalorder %s62, %s65
      %p74 = scmp.eq.s32.totalorder %s19, 1
      %p75 = por %p73, %p74
      %p76 = scmp.ne.s32.totalorder %s65, %s66
      %p77 = scmp.eq.s32.totalorder %s19, 0
      %p78 = por %p76, %p77
      %p79 = scmp.ne.s32.totalorder %s65, %s66
      %p80 = scmp.eq.s32.totalorder %s20, 1
      %p81 = por %p79, %p80
      %p83 = scmp.ne.s32.totalorder %s66, %s82
      %p84 = scmp.eq.s32.totalorder %s20, 0
      %p85 = por %p83, %p84
      %s86 = ssub.s32 %s22, %s29
      %p87 = scmp.eq.s32.totalorder %s86, 0
      %s89 = sadd.s32 %s88, 1
      %s90 = scalar_select %p87, %s88, %s89
      %p93 = pneg %p87
      %p94 = scmp.eq.s32.totalorder %s14, 1
      %p95 = por %p93, %p94
      %p96 = scmp.ne.s32.totalorder %s88, %s91
      %p97 = scmp.eq.s32.totalorder %s14, 0
      %p98 = por %p96, %p97
      %p99 = scmp.ne.s32.totalorder %s88, %s91
      %p100 = scmp.eq.s32.totalorder %s19, 1
      %p101 = por %p99, %p100
      %p102 = scmp.ne.s32.totalorder %s91, %s92
      %p103 = scmp.eq.s32.totalorder %s19, 0
      %p104 = por %p102, %p103
      %p105 = scmp.ne.s32.totalorder %s91, %s92
      %p106 = scmp.eq.s32.totalorder %s20, 1
      %p107 = por %p105, %p106
      %p109 = scmp.ne.s32.totalorder %s92, %s108
      %p110 = scmp.eq.s32.totalorder %s20, 0
      %p111 = por %p109, %p110
      %s112 = ssub.s32 %s22, %s29
      %p113 = scmp.eq.s32.totalorder %s112, 0
      %s115 = sadd.s32 %s114, 1
      %s116 = scalar_select %p113, %s114, %s115
      %p119 = pneg %p113
      %p120 = scmp.eq.s32.totalorder %s14, 1
      %p121 = por %p119, %p120
      %p122 = scmp.ne.s32.totalorder %s114, %s117
      %p123 = scmp.eq.s32.totalorder %s14, 0
      %p124 = por %p122, %p123
      %p125 = scmp.ne.s32.totalorder %s114, %s117
      %p126 = scmp.eq.s32.totalorder %s19, 1
      %p127 = por %p125, %p126
      %p128 = scmp.ne.s32.totalorder %s117, %s118
      %p129 = scmp.eq.s32.totalorder %s19, 0
      %p130 = por %p128, %p129
      %p131 = scmp.ne.s32.totalorder %s117, %s118
      %p132 = scmp.eq.s32.totalorder %s20, 1
      %p133 = por %p131, %p132
      %p135 = scmp.ne.s32.totalorder %s118, %s134
      %p136 = scmp.eq.s32.totalorder %s20, 0
      %p137 = por %p135, %p136
      %s139 = sadd.s32 %s138, 1
      %p142 = scmp.eq.s32.totalorder %s14, 1
      %p143 = scmp.ne.s32.totalorder %s138, %s140
      %p144 = scmp.eq.s32.totalorder %s14, 0
      %p145 = por %p143, %p144
      %p146 = scmp.ne.s32.totalorder %s138, %s140
      %p147 = scmp.eq.s32.totalorder %s19, 1
      %p148 = por %p146, %p147
      %p149 = scmp.ne.s32.totalorder %s140, %s141
      %p150 = scmp.eq.s32.totalorder %s19, 0
      %p151 = por %p149, %p150
      %p152 = scmp.ne.s32.totalorder %s140, %s141
      %p153 = scmp.eq.s32.totalorder %s20, 1
      %p154 = por %p152, %p153
      %p156 = scmp.ne.s32.totalorder %s141, %s155
      %p157 = scmp.eq.s32.totalorder %s20, 0
      %p158 = por %p156, %p157
      %s159 = ssub.s32 %s21, %s33
      %p160 = scmp.eq.s32.totalorder %s159, 0
      %s162 = sadd.s32 %s161, 1
      %s163 = scalar_select %p160, %s161, %s162
      %p166 = pneg %p160
      %p167 = scmp.eq.s32.totalorder %s14, 1
      %p168 = por %p166, %p167
      %p169 = scmp.ne.s32.totalorder %s161, %s164
      %p170 = scmp.eq.s32.totalorder %s14, 0
      %p171 = por %p169, %p170
      %p172 = scmp.ne.s32.totalorder %s161, %s164
      %p173 = scmp.eq.s32.totalorder %s19, 1
      %p174 = por %p172, %p173
      %p175 = scmp.ne.s32.totalorder %s164, %s165
      %p176 = scmp.eq.s32.totalorder %s19, 0
      %p177 = por %p175, %p176
      %p178 = scmp.ne.s32.totalorder %s164, %s165
      %p179 = scmp.eq.s32.totalorder %s20, 1
      %p180 = por %p178, %p179
      %p182 = scmp.ne.s32.totalorder %s165, %s181
      %p183 = scmp.eq.s32.totalorder %s20, 0
      %p184 = por %p182, %p183
      %p185 = scmp.le.s32.totalorder 1, %s14
      %p186 = scmp.lt.s32.totalorder %s14, 3
      %p187 = pnand %p185, %p186
      %p188 = pneg %p187
      // Predicated region
      $region9: #{ti_compatible_mlp.1} parent=5 // pred_check
        _
      $region10: #{ti_compatible_mlp.1} parent=5 // pred_check_branch
        %190 = sbr.rel (%p187) target = $region12
      $region11: #{ti_compatible_mlp.1} parent=5 // pred_region
        %s191 = ssub.s32 %s14, 1
        // Predicated region
        $region13: #{ti_compatible_mlp.1} parent=11 // pred_check
          %p192 = pneg %p78
        $region14: #{ti_compatible_mlp.1} parent=11 // pred_check_branch
          %194 = sbr.rel (%p192) target = $region16
        $region15: #{ti_compatible_mlp.1} parent=11 // pred_region
          %p195 = scmp.lt.s32.totalorder %s24, 0
          %s196 = scalar_select %p195, %s24, 0
          %s197 = smul.addr %s196, 4
          %s198 = scalar_lea.vmem %s1, %s197
        $region16: #{ti_compatible_mlp.1} parent=11 // pred_fallthru
          _
        // Predicated region
        $region17: #{ti_compatible_mlp.1} parent=11 // pred_check
          %p199 = pneg %p104
        $region18: #{ti_compatible_mlp.1} parent=11 // pred_check_branch
          %201 = sbr.rel (%p199) target = $region20
        $region19: #{ti_compatible_mlp.1} parent=11 // pred_region
          %p202 = scmp.lt.s32.totalorder %s24, 0
          %s203 = scalar_select %p202, %s24, 0
          %s204 = scalar_lea.vmem %s2, %s203
        $region20: #{ti_compatible_mlp.1} parent=11 // pred_fallthru
          _
        // Predicated region
        $region21: #{ti_compatible_mlp.1} parent=11 // pred_check
          %p205 = pneg %p130
        $region22: #{ti_compatible_mlp.1} parent=11 // pred_check_branch
          %207 = sbr.rel (%p205) target = $region24
        $region23: #{ti_compatible_mlp.1} parent=11 // pred_region
          %s208 = smul.u32 16, %s24
          %p209 = scmp.lt.s32.totalorder %s208, 15
          %s210 = scalar_select %p209, %s208, 15
          %s211 = smul.addr %s210, 4
          %s212 = scalar_lea.vmem %s3, %s211
          %s213 = smul.u32 16, %s24
        $region24: #{ti_compatible_mlp.1} parent=11 // pred_fallthru
          _
        // Predicated region
        $region25: #{ti_compatible_mlp.1} parent=11 // pred_check
          %p214 = pneg %p151
        $region26: #{ti_compatible_mlp.1} parent=11 // pred_check_branch
          %216 = sbr.rel (%p214) target = $region28
        $region27: #{ti_compatible_mlp.1} parent=11 // pred_region
          _
        $region28: #{ti_compatible_mlp.1} parent=11 // pred_fallthru
          _
      $region12: #{ti_compatible_mlp.1} parent=5 // pred_fallthru
        _
      %p217 = scmp.lt.s32.totalorder %s14, 2
      // Predicated region
      $region29: #{ti_compatible_mlp.1} parent=5 // pred_check
        %p218 = pneg %p217
      $region30: #{ti_compatible_mlp.1} parent=5 // pred_check_branch
        %220 = sbr.rel (%p218) target = $region32
      $region31: #{ti_compatible_mlp.1} parent=5 // pred_region
        // Predicated region
        $region33: #{ti_compatible_mlp.1} parent=31 // pred_check
          %p221 = pneg %p46
        $region34: #{ti_compatible_mlp.1} parent=31 // pred_check_branch
          %223 = sbr.rel (%p221) target = $region36
        $region35: #{ti_compatible_mlp.1} parent=31 // pred_region
          %p224 = scmp.lt.s32.totalorder %s21, 1
          %s225 = scalar_select %p224, %s21, 1
          %s226 = smul.addr %s225, 8
          %s227 = scalar_lea.vmem %s0, %s226
        $region36: #{ti_compatible_mlp.1} parent=31 // pred_fallthru
          _
      $region32: #{ti_compatible_mlp.1} parent=5 // pred_fallthru
        _
      %p228 = scmp.le.s32.totalorder 1, %s14
      %p229 = scmp.lt.s32.totalorder %s14, 3
      %p230 = pnand %p228, %p229
      %p231 = pneg %p230
      // Predicated region
      $region37: #{ti_compatible_mlp.1} parent=5 // pred_check
        _
      $region38: #{ti_compatible_mlp.1} parent=5 // pred_check_branch
        %233 = sbr.rel (%p230) target = $region40
      $region39: #{ti_compatible_mlp.1} parent=5 // pred_region
        %s234 = ssub.s32 %s14, 1
        %p235 = scmp.lt.s32.totalorder %s23, 1
        %s236 = scalar_select %p235, %s23, 1
        %s237 = smul.addr %s236, 8
        %s238 = scalar_lea.vmem %s0, %s237
        %p239 = pneg %p52
        %p240 = pneg %p49
        %p241 = scmp.lt.s32.totalorder %s24, 0
        %s242 = scalar_select %p241, %s24, 0
        %s243 = smul.addr %s242, 4
        %s244 = scalar_lea.vmem %s1, %s243
        %p245 = pneg %p78
        %p246 = pneg %p75
        %p247 = scmp.lt.s32.totalorder %s24, 0
        %s248 = scalar_select %p247, %s24, 0
        %s249 = scalar_lea.vmem %s2, %s248
        %p250 = pneg %p104
        %p251 = pneg %p101
        %s252 = smul.u32 16, %s24
        %p253 = scmp.lt.s32.totalorder %s252, 15
        %s254 = scalar_select %p253, %s252, 15
        %s255 = smul.addr %s254, 4
        %s256 = scalar_lea.vmem %s3, %s255
        %p257 = pneg %p130
        %p258 = pneg %p127
        %p259 = pneg %p151
        %p260 = pneg %p148
        %p261 = pneg %p177
        %p262 = pneg %p174
        %s263 = sand.u32 %s164, 1
        %s264 = scalar_lea.sflag [#allocation4], %s263
        %s265 = sand.u32 %s164, 1
        %s266 = smul.addr %s265, 8
        %s267 = scalar_lea.vmem [#allocation3], %s266
        %p268 = scmp.lt.s32.totalorder %s23, 1
        %s269 = scalar_select %p268, %s23, 1
        %s270 = smul.addr %s269, 8
        %s271 = scalar_lea.vmem %s0, %s270
        %p272 = scmp.lt.s32.totalorder %s24, 0
        %s273 = scalar_select %p272, %s24, 0
        %s274 = smul.addr %s273, 4
        %s275 = scalar_lea.vmem %s1, %s274
        %p276 = scmp.lt.s32.totalorder %s24, 0
        %s277 = scalar_select %p276, %s24, 0
        %s278 = scalar_lea.vmem %s2, %s277
        %s279 = smul.u32 16, %s24
        %p280 = scmp.lt.s32.totalorder %s279, 15
        %s281 = scalar_select %p280, %s279, 15
        %s282 = smul.addr %s281, 4
        %s283 = scalar_lea.vmem %s3, %s282
        %s284 = smul.u32 16, %s24
        %p286 = scmp.eq.s32.totalorder %s24, 0
        // Predicated region
        $region41: #{ti_compatible_mlp.1} parent=39 // pred_check
          %p287 = pneg %p286
        $region42: #{ti_compatible_mlp.1} parent=39 // pred_check_branch
          %289 = sbr.rel (%p287) target = $region44
        $region43: #{ti_compatible_mlp.1} parent=39 // pred_region
          %vm290 = vcmask 261120
          %291 = vst.msk [vmem:[#allocation2] sm:$0xff] %vm290, 0.0
        $region44: #{ti_compatible_mlp.1} parent=39 // pred_fallthru
          _
        %v292 = vld [vmem:[%s271] sm:$0xff]
        %v293 = vpack.c.bf16 %v292, %v292
        %v294 = vld [vmem:[%s275] sm:$0xf]
        %v295 = vld [vmem:[%s275 + $0x4] sm:$0xf]
        %v296 = vld [vmem:[%s275 + $0x8] sm:$0xf]
        %v297 = vld [vmem:[%s275 + $0xc] sm:$0xf]
        %v298 = vld [vmem:[%s278] sm:$0x1]
        %v300 = vperm.slane %v298, 0
        %v306 = vunpack.c.l.b16 %v294
        %v307 = vunpack.c.l.b16 %v295
        %v308 = vunpack.c.l.b16 %v296
        %v309 = vunpack.c.l.b16 %v297
        %v310 = vpack.c.b16 %v307, %v306
        %v311 = vpack.c.b16 %v309, %v308
        %vm314 = vcmask 261120
        %v316 = vsel %vm314, %v293, 0
        %318 = vmatpush.bf16.msra.mxu0 0
        %319 = vmatpush.bf16.msra.mxu0 0
        %320 = vmatpush.bf16.msra.mxu0 0
        %321 = vmatpush.bf16.msra.mxu0 0
        %322 = vmatpush.bf16.msra.mxu0 0
        %323 = vmatpush.bf16.msra.mxu0 0
        %324 = vmatpush.bf16.msra.mxu0 %v311
        %325 = vmatpush.bf16.msra.mxu0 %v310
        %326 = vmatmul.bf16.gmra.mxu0 %v316
        %v327 = vpop.f32.mrf.mxu0
        %v328 = vadd.f32 %v300, %v327
        %v329 = vpop.f32.mrf.mxu0
        %330 = vdwg.mxu0
        %v331 = vmul.f32 %v328, 0.5
        %v332 = vmul.f32 %v328, 0.70710677
        %v333 = vmul.f32 %v332, %v332
        %v334 = vmin.f32 16.0, %v333
        %v335 = vmul.f32 %v334, 2.1237322e-06
        %v336 = vadd.f32 %v335, 0.00028619796
        %v337 = vmul.f32 %v334, %v336
        %v338 = vadd.f32 %v337, 0.0036580483
        %v339 = vmul.f32 %v334, %v338
        %v340 = vadd.f32 %v339, 0.05243302
        %v341 = vmul.f32 %v334, %v340
        %v342 = vadd.f32 %v341, 0.18741608
        %v343 = vmul.f32 %v334, %v342
        %v344 = vadd.f32 %v343, 1.1283791
        %v345 = vmul.f32 %v332, %v344
        %v346 = vmul.f32 %v334, 3.8918573e-05
        %v347 = vadd.f32 %v346, 0.001143296
        %v348 = vmul.f32 %v334, %v347
        %v349 = vadd.f32 %v348, 0.014752088
        %v350 = vmul.f32 %v334, %v349
        %v351 = vadd.f32 %v350, 0.112945676
        %v352 = vmul.f32 %v334, %v351
        %v353 = vadd.f32 %v352, 0.4994258
        %v354 = vmul.f32 %v334, %v353
        %v355 = vadd.f32 %v354, 1.0
        %v356 = vrcp.pop %v355
        %v357 = vmul.f32 %v355, %v356
        %v358 = vsub.f32 1.0, %v357
        %v359 = vmul.f32 %v356, %v358
        %v360 = vadd.f32 %v356, %v359
        %vm361 = vweird.f32 %v355
        %vm362 = vweird.f32 %v356
        %vm363 = vmor %vm361, %vm362
        %v364 = vsel %vm363, %v356, %v360
        %v365 = vand.u32 2147483647, %v355
        %vm366 = vcmp.eq.f32.partialorder %v365, 8.507059e+37
        %v367 = vand.u32 %v355, 2147483648
        %v368 = vor.u32 1.1754944e-38, %v367
        %v369 = vsel %vm366, %v368, %v364
        %v370 = vmul.f32 %v345, %v369
        %v371 = vmin.f32 %v370, 1.0
        %v372 = vmax.f32 %v371, -1.0
        %v373 = vadd.f32 %v372, 1.0
        %v374 = vmul.f32 %v331, %v373
        %v375 = vld [vmem:[#allocation2] sm:$0xff]
        %v376 = vpack.c.bf16 %v374, %v374
        %v377 = vld [vmem:[%s283] sm:$0xf]
        %v378 = vld [vmem:[%s283 + $0x4] sm:$0xf]
        %v379 = vld [vmem:[%s283 + $0x8] sm:$0xf]
        %v380 = vld [vmem:[%s283 + $0xc] sm:$0xf]
        %v381 = vld [vmem:[%s283 + $0x10] sm:$0xf]
        %v382 = vld [vmem:[%s283 + $0x14] sm:$0xf]
        %v383 = vld [vmem:[%s283 + $0x18] sm:$0xf]
        %v384 = vld [vmem:[%s283 + $0x1c] sm:$0xf]
        %v385 = vld [vmem:[%s283 + $0x20] sm:$0xf]
        %v386 = vld [vmem:[%s283 + $0x24] sm:$0xf]
        %v387 = vld [vmem:[%s283 + $0x28] sm:$0xf]
        %v388 = vld [vmem:[%s283 + $0x2c] sm:$0xf]
        %v389 = vld [vmem:[%s283 + $0x30] sm:$0xf]
        %v390 = vld [vmem:[%s283 + $0x34] sm:$0xf]
        %v391 = vld [vmem:[%s283 + $0x38] sm:$0xf]
        %v392 = vld [vmem:[%s283 + $0x3c] sm:$0xf]
        %v409 = vunpack.c.l.b16 %v377
        %v410 = vunpack.c.l.b16 %v378
        %v411 = vunpack.c.l.b16 %v379
        %v412 = vunpack.c.l.b16 %v380
        %v413 = vunpack.c.l.b16 %v381
        %v414 = vunpack.c.l.b16 %v382
        %v415 = vunpack.c.l.b16 %v383
        %v416 = vunpack.c.l.b16 %v384
        %v417 = vunpack.c.l.b16 %v385
        %v418 = vunpack.c.l.b16 %v386
        %v419 = vunpack.c.l.b16 %v387
        %v420 = vunpack.c.l.b16 %v388
        %v421 = vunpack.c.l.b16 %v389
        %v422 = vunpack.c.l.b16 %v390
        %v423 = vunpack.c.l.b16 %v391
        %v424 = vunpack.c.l.b16 %v392
        %v425 = vpack.c.b16 %v410, %v409
        %v426 = vpack.c.b16 %v412, %v411
        %v427 = vpack.c.b16 %v414, %v413
        %v428 = vpack.c.b16 %v416, %v415
        %v429 = vpack.c.b16 %v418, %v417
        %v430 = vpack.c.b16 %v420, %v419
        %v431 = vpack.c.b16 %v422, %v421
        %v432 = vpack.c.b16 %v424, %v423
        %441 = vmatpush.bf16.msra.mxu0 %v432
        %442 = vmatpush.bf16.msra.mxu0 %v431
        %443 = vmatpush.bf16.msra.mxu0 %v430
        %444 = vmatpush.bf16.msra.mxu0 %v429
        %445 = vmatpush.bf16.msra.mxu0 %v428
        %446 = vmatpush.bf16.msra.mxu0 %v427
        %447 = vmatpush.bf16.msra.mxu0 %v426
        %448 = vmatpush.bf16.msra.mxu0 %v425
        %449 = vmatmul.bf16.gmra.mxu0 %v376
        %v450 = vpop.f32.mrf.mxu0
        %v451 = vadd.f32 0.0, %v450
        %v452 = vpop.f32.mrf.mxu0
        %453 = vdwg.mxu0
        %v454 = vadd.f32 %v375, %v451
        %455 = vst.msk [vmem:[#allocation2] sm:$0xff] %vm314, %v454
        // Predicated region
        $region45: #{ti_compatible_mlp.1} parent=39 // pred_check
          %p456 = pneg %p286
        $region46: #{ti_compatible_mlp.1} parent=39 // pred_check_branch
          %458 = sbr.rel (%p456) target = $region48
        $region47: #{ti_compatible_mlp.1} parent=39 // pred_region
          %v459 = vld [vmem:[#allocation2] sm:$0xff]
          %v460 = vld [vmem:[%s4] sm:$0x1]
          %v462 = vperm.slane %v460, 0
          %v464 = vadd.f32 %v459, %v462
          %465 = vst.msk [vmem:[%s267] sm:$0xff] %vm314, %v464
        $region48: #{ti_compatible_mlp.1} parent=39 // pred_fallthru
          _
        %s466 = sand.u32 %s164, 1
        %s467 = scalar_lea.sflag [#allocation4], %s466
        %s468 = sand.u32 %s164, 1
        %s469 = smul.addr %s468, 8
        %s470 = scalar_lea.vmem [#allocation3], %s469
        // Predicated region
        $region49: #{ti_compatible_mlp.1} parent=39 // pred_check
          %p471 = pneg %p174
        $region50: #{ti_compatible_mlp.1} parent=39 // pred_check_branch
          %473 = sbr.rel (%p471) target = $region52
        $region51: #{ti_compatible_mlp.1} parent=39 // pred_region
          %475 = vsyncadd %s467, 0
          %s476 = smul.addr %s23, 8
          %s477 = scalar_lea.hbm %s5, %s476
          %s479 = sshll.u32 %s470, 4
          %s480 = int_to_ptr.vmem [resolvable:$true] %s479
          %s481 = sshll.u32 %s477, 4
          %s482 = int_to_ptr.hbm [resolvable:$true] %s481
          %484 = dma.vmem_to_hbm [thread:$0]  %s480, 128, %s482, %s467
        $region52: #{ti_compatible_mlp.1} parent=39 // pred_fallthru
          _
      $region40: #{ti_compatible_mlp.1} parent=5 // pred_fallthru
        _
      %p485 = scmp.le.s32.totalorder 2, %s14
      // Predicated region
      $region53: #{ti_compatible_mlp.1} parent=5 // pred_check
        %p486 = pneg %p485
      $region54: #{ti_compatible_mlp.1} parent=5 // pred_check_branch
        %488 = sbr.rel (%p486) target = $region56
      $region55: #{ti_compatible_mlp.1} parent=5 // pred_region
        %s489 = ssub.s32 %s14, 2
        // Predicated region
        $region57: #{ti_compatible_mlp.1} parent=55 // pred_check
          %p490 = pneg %p180
        $region58: #{ti_compatible_mlp.1} parent=55 // pred_check_branch
          %492 = sbr.rel (%p490) target = $region60
        $region59: #{ti_compatible_mlp.1} parent=55 // pred_region
          %s493 = sand.u32 %s165, 1
          %s494 = scalar_lea.sflag [#allocation4], %s493
          %s495 = sand.u32 %s165, 1
          %s496 = smul.addr %s495, 8
          %s497 = scalar_lea.vmem [#allocation3], %s496
          %499 = dma.done %s494, 128
        $region60: #{ti_compatible_mlp.1} parent=55 // pred_fallthru
          _
      $region56: #{ti_compatible_mlp.1} parent=5 // pred_fallthru
        _
    $region6: #{ti_compatible_mlp.1} parent=1 // loop_footer
      %s18 = sadd.s32 1, %s14
    $region7: #{ti_compatible_mlp.1} parent=1 // loop_footer_branch
      %13 = sbr.rel target = $region3
    $region8: #{ti_compatible_mlp.1} parent=1 // loop_exit
      _
    %500 = vsyncpa [#allocation4], 1
    %s501 = scalar_lea.sflag [#allocation4], 1
    %502 = vsyncpa %s501, 1

</llo_original>
